<compile_context>
chip_gen: v7x
topology: tpu7x:2x2x1
jax: 0.10.0
libtpu: 0.0.40
codegen_flags: <defaults>
</compile_context>

<pallas_src>
import jax
import jax.numpy as jnp
from jax.experimental import pallas as pl
from jax.experimental.pallas import tpu as pltpu


_SQRT_HALF = 0.7071067811865476


def _ffn_kernel(x_ref, w1_ref, b1_ref, g_ref, beta_ref, w2_ref, b2_ref, o_ref):
    # x_ref:    (TM, F)  one tile of tokens (input dtype)
    # w1_ref:   (F, E)   bf16 Linear1 weight, stored (in, out)
    # b1_ref:   (1, E)   f32
    # g_ref:    (1, E)   f32 LayerNorm gamma
    # beta_ref: (1, E)   f32 LayerNorm beta
    # w2_ref:   (E, F)   bf16 Linear2 weight, stored (in, out)
    # b2_ref:   (1, F)   f32
    # o_ref:    (TM, F)

    # Linear 1 on the MXU: bf16 x bf16 -> f32 accumulator.
    x = x_ref[...].astype(jnp.bfloat16)
    h = jnp.dot(x, w1_ref[...], preferred_element_type=jnp.float32)
    h = h + b1_ref[...]

    # LayerNorm over the hidden dim (f32 stats, PyTorch eps=1e-5, biased variance).
    mean = jnp.mean(h, axis=-1, keepdims=True)
    centered = h - mean
    var = jnp.mean(centered * centered, axis=-1, keepdims=True)
    h = centered * jax.lax.rsqrt(var + 1e-5)
    h = h * g_ref[...] + beta_ref[...]

    # GELU, exact erf form (PyTorch nn.GELU() default).
    h = 0.5 * h * (1.0 + jax.lax.erf(h * _SQRT_HALF))

    # Dropout(0.2): identity in inference mode.
    # TODO(synk): training-mode dropout would need pltpu.prng_seed / prng_random_bits.

    # Linear 2 on the MXU: cast hidden back to bf16, accumulate in f32.
    out = jnp.dot(h.astype(jnp.bfloat16), w2_ref[...],
                  preferred_element_type=jnp.float32)
    out = out + b2_ref[...]
    o_ref[...] = out.astype(o_ref.dtype)


def _round_up(x, m):
    return (x + m - 1) // m * m


def feed_forward(x, params, *, tile_m=128):
    """Fused FeedForward. x: [..., fan_in_out] -> [..., fan_in_out].

    tile_m: rows processed per grid step (multiple of 8).  128-512 is the MXU
    sweet spot on v5e/v6e/v7x; cap it if tile_m * n_embd * 4B (the f32 hidden)
    gets into the multi-MiB range.
    """
    w1, b1, gamma, beta, w2, b2 = params
    fan_in_out, n_embd = w1.shape
    assert x.shape[-1] == fan_in_out
    assert tile_m % 8 == 0

    # MXU operands in bf16 (converted once here, not per grid step).
    w1 = w1.astype(jnp.bfloat16)
    w2 = w2.astype(jnp.bfloat16)
    # Bias / LayerNorm params stay f32: they act on the f32 accumulator.
    b1 = b1.astype(jnp.float32).reshape(1, n_embd)
    gamma = gamma.astype(jnp.float32).reshape(1, n_embd)
    beta = beta.astype(jnp.float32).reshape(1, n_embd)
    b2 = b2.astype(jnp.float32).reshape(1, fan_in_out)

    orig_shape = x.shape
    x2 = x.reshape(-1, fan_in_out)
    n = x2.shape[0]

    # Row tile: big enough to keep the MXU fed, clamped for tiny inputs so we
    # don't pad a handful of rows up to 128.
    tm = min(tile_m, _round_up(n, 8))
    n_total = _round_up(n, tm)
    if n_total != n:
        x2 = jnp.pad(x2, ((0, n_total - n), (0, 0)))

    out = pl.pallas_call(
        _ffn_kernel,
        out_shape=jax.ShapeDtypeStruct((n_total, fan_in_out), x.dtype),
        grid_spec=pltpu.PrefetchScalarGridSpec(
            num_scalar_prefetch=0,
            grid=(n_total // tm,),
            in_specs=[
                # Streamed token tile.
                pl.BlockSpec((tm, fan_in_out), lambda i: (i, 0)),
                # Weights / norm params: constant index_map -> DMA'd once and
                # kept resident across the whole row grid.
                # NOTE: at transformer scale, single-buffer these
                # (pipeline_mode=pl.Buffered(1)) or chunk n_embd with a reduction
                # grid axis so the resident weights fit v7x's 64 MiB VMEM.
                pl.BlockSpec((fan_in_out, n_embd), lambda i: (0, 0)),
                pl.BlockSpec((1, n_embd), lambda i: (0, 0)),
                pl.BlockSpec((1, n_embd), lambda i: (0, 0)),
                pl.BlockSpec((1, n_embd), lambda i: (0, 0)),
                pl.BlockSpec((n_embd, fan_in_out), lambda i: (0, 0)),
                pl.BlockSpec((1, fan_in_out), lambda i: (0, 0)),
            ],
            # NOTE: output lane width = fan_in_out; choose fan_in_out as a
            # multiple of 128 in real models for unmasked lane-dense stores.
            out_specs=pl.BlockSpec((tm, fan_in_out), lambda i: (i, 0)),
        ),
        compiler_params=pltpu.CompilerParams(
            # Row tiles are independent -> shard across TensorCores on v7x.
            dimension_semantics=("parallel",)),
    )(x2, w1, b1, gamma, beta, w2, b2)

    if n_total != n:
        out = out[:n]
    return out.reshape(orig_shape)


def init_params(key, fan_in_out, n_embd, dtype=jnp.float32):
    """Deterministic init mimicking nn.Linear / nn.LayerNorm defaults."""
    k1, k2, k3, k4 = jax.random.split(key, 4)
    lim1 = 1.0 / (fan_in_out ** 0.5)
    lim2 = 1.0 / (n_embd ** 0.5)
    # Weights stored as (in, out) so the kernel does x @ W.
    w1 = jax.random.uniform(k1, (fan_in_out, n_embd), dtype, -lim1, lim1)
    b1 = jax.random.uniform(k2, (1, n_embd), dtype, -lim1, lim1)
    gamma = jnp.ones((1, n_embd), dtype)
    beta = jnp.zeros((1, n_embd), dtype)
    w2 = jax.random.uniform(k3, (n_embd, fan_in_out), dtype, -lim2, lim2)
    b2 = jax.random.uniform(k4, (1, fan_in_out), dtype, -lim2, lim2)
    return (w1, b1, gamma, beta, w2, b2)


def _reference(x, params, *, bf16_matmul=True):
    """Pure-JAX reference. bf16_matmul=True mirrors the kernel's MXU precision."""
    w1, b1, gamma, beta, w2, b2 = params
    if bf16_matmul:
        xm, w1m, w2m = x.astype(jnp.bfloat16), w1.astype(jnp.bfloat16), w2.astype(jnp.bfloat16)
    else:
        xm, w1m, w2m = x, w1, w2
    h = jnp.dot(xm, w1m, preferred_element_type=jnp.float32) + b1.astype(jnp.float32)
    mean = jnp.mean(h, axis=-1, keepdims=True)
    var = jnp.mean((h - mean) ** 2, axis=-1, keepdims=True)
    h = (h - mean) * jax.lax.rsqrt(var + 1e-5) * gamma + beta
    h = 0.5 * h * (1.0 + jax.lax.erf(h * _SQRT_HALF))
    if bf16_matmul:
        h = h.astype(jnp.bfloat16)
    return jnp.dot(h, w2m, preferred_element_type=jnp.float32) + b2.astype(jnp.float32)


if __name__ == "__main__":
    fan_in_out = 32   # feature dim of the input / output
    n_embd = 64       # hidden dim

    key = jax.random.PRNGKey(0)
    kx, kx2, kp = jax.random.split(key, 3)
    params = init_params(kp, fan_in_out, n_embd)

    # Small case: [B, T, fan_in_out] = [2, 8, 32].
    x = jax.random.normal(kx, (2, 8, fan_in_out), jnp.float32)
    y = jax.block_until_ready(feed_forward(x, params))
    assert y.shape == x.shape
    y_ref = _reference(x, params, bf16_matmul=True)
    assert jnp.allclose(y, y_ref, atol=5e-3, rtol=5e-3), "mismatch vs bf16-matched reference"
    y_ref32 = _reference(x, params, bf16_matmul=False)
    assert jnp.allclose(y, y_ref32, atol=3e-2, rtol=3e-2), "mismatch vs f32 reference"

    # Larger case: exercises the 128-row tiling and tail padding (N = 1000 rows).
    xl = jax.random.normal(kx2, (4, 250, fan_in_out), jnp.float32)
    yl = jax.block_until_ready(feed_forward(xl, params, tile_m=128))
    assert yl.shape == xl.shape
    yl_ref = _reference(xl, params, bf16_matmul=True)
    assert jnp.allclose(yl, yl_ref, atol=5e-3, rtol=5e-3), "mismatch (tiled case)"

    print("KERNEL_OK")
</pallas_src>

<mosaic_0001>
module attributes {stable_mosaic.version = 11 : i64} {
  func.func @_ffn_kernel(%arg0: i32, %arg1: memref<16x32xf32, #tpu.memory_space<vmem>>, %arg2: memref<32x64xbf16, #tpu.memory_space<vmem>>, %arg3: memref<1x64xf32, #tpu.memory_space<vmem>>, %arg4: memref<1x64xf32, #tpu.memory_space<vmem>>, %arg5: memref<1x64xf32, #tpu.memory_space<vmem>>, %arg6: memref<64x32xbf16, #tpu.memory_space<vmem>>, %arg7: memref<1x32xf32, #tpu.memory_space<vmem>>, %arg8: memref<16x32xf32, #tpu.memory_space<vmem>>) attributes {dimension_semantics = [#tpu.dimension_semantics<parallel>], iteration_bounds = array<i64: 1>, scalar_prefetch = 0 : i64, scratch_operands = 0 : i64, tpu.core_type = #tpu.core_type<tc>, window_params = [{transform_indices = @transform_0, window_bounds = array<i64: 16, 32>}, {pipeline_mode = #tpu.pipeline_mode<synchronous>, transform_indices = @transform_1, window_bounds = array<i64: 32, 64>}, {pipeline_mode = #tpu.pipeline_mode<synchronous>, transform_indices = @transform_2, window_bounds = array<i64: 1, 64>}, {pipeline_mode = #tpu.pipeline_mode<synchronous>, transform_indices = @transform_3, window_bounds = array<i64: 1, 64>}, {pipeline_mode = #tpu.pipeline_mode<synchronous>, transform_indices = @transform_4, window_bounds = array<i64: 1, 64>}, {pipeline_mode = #tpu.pipeline_mode<synchronous>, transform_indices = @transform_5, window_bounds = array<i64: 64, 32>}, {pipeline_mode = #tpu.pipeline_mode<synchronous>, transform_indices = @transform_6, window_bounds = array<i64: 1, 32>}, {transform_indices = @transform_7, window_bounds = array<i64: 16, 32>}]} {
    %c0 = arith.constant 0 : index
    %c0_0 = arith.constant 0 : index
    %0 = vector.load %arg1[%c0, %c0_0] : memref<16x32xf32, #tpu.memory_space<vmem>>, vector<16x32xf32>
    %1 = arith.truncf %0 : vector<16x32xf32> to vector<16x32xbf16>
    %c0_1 = arith.constant 0 : index
    %c0_2 = arith.constant 0 : index
    %2 = vector.load %arg2[%c0_1, %c0_2] : memref<32x64xbf16, #tpu.memory_space<vmem>>, vector<32x64xbf16>
    %cst = arith.constant dense<0.000000e+00> : vector<16x64xf32>
    %3 = tpu.matmul %1, %2, %cst {dimension_numbers = #tpu.dot_dimension_numbers<[1], [0], [0], [1], [0, 0, 1, 1], [], []>} : vector<16x32xbf16>, vector<32x64xbf16>, vector<16x64xf32> -> vector<16x64xf32>
    %c0_3 = arith.constant 0 : index
    %c0_4 = arith.constant 0 : index
    %4 = vector.load %arg3[%c0_3, %c0_4] : memref<1x64xf32, #tpu.memory_space<vmem>>, vector<1x64xf32>
    %5 = vector.broadcast %4 : vector<1x64xf32> to vector<16x64xf32>
    %6 = arith.addf %3, %5 : vector<16x64xf32>
    %cst_5 = arith.constant dense<0.000000e+00> : vector<16xf32>
    %7 = vector.multi_reduction <add>, %6, %cst_5 [1] : vector<16x64xf32> to vector<16xf32>
    %8 = vector.shape_cast %7 : vector<16xf32> to vector<16x1xf32>
    %cst_6 = arith.constant 6.400000e+01 : f32
    %9 = vector.broadcast %cst_6 : f32 to vector<16x1xf32>
    %10 = arith.divf %8, %9 : vector<16x1xf32>
    %11 = vector.broadcast %10 : vector<16x1xf32> to vector<16x64xf32>
    %12 = arith.subf %6, %11 : vector<16x64xf32>
    %13 = arith.mulf %12, %12 : vector<16x64xf32>
    %cst_7 = arith.constant dense<0.000000e+00> : vector<16xf32>
    %14 = vector.multi_reduction <add>, %13, %cst_7 [1] : vector<16x64xf32> to vector<16xf32>
    %15 = vector.shape_cast %14 : vector<16xf32> to vector<16x1xf32>
    %cst_8 = arith.constant 6.400000e+01 : f32
    %16 = vector.broadcast %cst_8 : f32 to vector<16x1xf32>
    %17 = arith.divf %15, %16 : vector<16x1xf32>
    %cst_9 = arith.constant 9.99999974E-6 : f32
    %18 = vector.broadcast %cst_9 : f32 to vector<16x1xf32>
    %19 = arith.addf %17, %18 : vector<16x1xf32>
    %20 = math.rsqrt %19 : vector<16x1xf32>
    %21 = vector.broadcast %20 : vector<16x1xf32> to vector<16x64xf32>
    %22 = arith.mulf %12, %21 : vector<16x64xf32>
    %c0_10 = arith.constant 0 : index
    %c0_11 = arith.constant 0 : index
    %23 = vector.load %arg4[%c0_10, %c0_11] : memref<1x64xf32, #tpu.memory_space<vmem>>, vector<1x64xf32>
    %24 = vector.broadcast %23 : vector<1x64xf32> to vector<16x64xf32>
    %25 = arith.mulf %22, %24 : vector<16x64xf32>
    %c0_12 = arith.constant 0 : index
    %c0_13 = arith.constant 0 : index
    %26 = vector.load %arg5[%c0_12, %c0_13] : memref<1x64xf32, #tpu.memory_space<vmem>>, vector<1x64xf32>
    %27 = vector.broadcast %26 : vector<1x64xf32> to vector<16x64xf32>
    %28 = arith.addf %25, %27 : vector<16x64xf32>
    %cst_14 = arith.constant 5.000000e-01 : f32
    %29 = vector.broadcast %cst_14 : f32 to vector<16x64xf32>
    %30 = arith.mulf %29, %28 : vector<16x64xf32>
    %cst_15 = arith.constant 0.707106769 : f32
    %31 = vector.broadcast %cst_15 : f32 to vector<16x64xf32>
    %32 = arith.mulf %28, %31 : vector<16x64xf32>
    %33 = math.erf %32 : vector<16x64xf32>
    %cst_16 = arith.constant 1.000000e+00 : f32
    %34 = vector.broadcast %cst_16 : f32 to vector<16x64xf32>
    %35 = arith.addf %34, %33 : vector<16x64xf32>
    %36 = arith.mulf %30, %35 : vector<16x64xf32>
    %37 = arith.truncf %36 : vector<16x64xf32> to vector<16x64xbf16>
    %c0_17 = arith.constant 0 : index
    %c0_18 = arith.constant 0 : index
    %38 = vector.load %arg6[%c0_17, %c0_18] : memref<64x32xbf16, #tpu.memory_space<vmem>>, vector<64x32xbf16>
    %cst_19 = arith.constant dense<0.000000e+00> : vector<16x32xf32>
    %39 = tpu.matmul %37, %38, %cst_19 {dimension_numbers = #tpu.dot_dimension_numbers<[1], [0], [0], [1], [0, 0, 1, 1], [], []>} : vector<16x64xbf16>, vector<64x32xbf16>, vector<16x32xf32> -> vector<16x32xf32>
    %c0_20 = arith.constant 0 : index
    %c0_21 = arith.constant 0 : index
    %40 = vector.load %arg7[%c0_20, %c0_21] : memref<1x32xf32, #tpu.memory_space<vmem>>, vector<1x32xf32>
    %41 = vector.broadcast %40 : vector<1x32xf32> to vector<16x32xf32>
    %42 = arith.addf %39, %41 : vector<16x32xf32>
    %c0_22 = arith.constant 0 : index
    %c0_23 = arith.constant 0 : index
    %43 = vector.load %arg8[%c0_22, %c0_23] : memref<16x32xf32, #tpu.memory_space<vmem>>, vector<16x32xf32>
    tpu.vector_store %arg8[%c0_22, %c0_23], %42 {strides = array<i32>} : memref<16x32xf32, #tpu.memory_space<vmem>>, vector<16x32xf32>,
    return
  }
  func.func @transform_0(%arg0: i32) -> (i32, i32) {
    %c0_i32 = arith.constant 0 : i32
    %c0_i32_0 = arith.constant 0 : i32
    return %arg0, %c0_i32 : i32, i32
  }
  func.func @transform_1(%arg0: i32) -> (i32, i32) {
    %c0_i32 = arith.constant 0 : i32
    %c0_i32_0 = arith.constant 0 : i32
    %c0_i32_1 = arith.constant 0 : i32
    return %c0_i32, %c0_i32_0 : i32, i32
  }
  func.func @transform_2(%arg0: i32) -> (i32, i32) {
    %c0_i32 = arith.constant 0 : i32
    %c0_i32_0 = arith.constant 0 : i32
    %c0_i32_1 = arith.constant 0 : i32
    return %c0_i32, %c0_i32_0 : i32, i32
  }
  func.func @transform_3(%arg0: i32) -> (i32, i32) {
    %c0_i32 = arith.constant 0 : i32
    %c0_i32_0 = arith.constant 0 : i32
    %c0_i32_1 = arith.constant 0 : i32
    return %c0_i32, %c0_i32_0 : i32, i32
  }
  func.func @transform_4(%arg0: i32) -> (i32, i32) {
    %c0_i32 = arith.constant 0 : i32
    %c0_i32_0 = arith.constant 0 : i32
    %c0_i32_1 = arith.constant 0 : i32
    return %c0_i32, %c0_i32_0 : i32, i32
  }
  func.func @transform_5(%arg0: i32) -> (i32, i32) {
    %c0_i32 = arith.constant 0 : i32
    %c0_i32_0 = arith.constant 0 : i32
    %c0_i32_1 = arith.constant 0 : i32
    return %c0_i32, %c0_i32_0 : i32, i32
  }
  func.func @transform_6(%arg0: i32) -> (i32, i32) {
    %c0_i32 = arith.constant 0 : i32
    %c0_i32_0 = arith.constant 0 : i32
    %c0_i32_1 = arith.constant 0 : i32
    return %c0_i32, %c0_i32_0 : i32, i32
  }
  func.func @transform_7(%arg0: i32) -> (i32, i32) {
    %c0_i32 = arith.constant 0 : i32
    %c0_i32_0 = arith.constant 0 : i32
    return %arg0, %c0_i32 : i32, i32
  }
}

</mosaic_0001>

<llo_original>
// kernel: tpu_custom_call.1
$region0: #{tpu_custom_call.1}
  #allocation0 [shape = 'u32[]', space=smem, size = 0x4, offset = 0x4, fixed_abs, tag = 'smem constant byte address 0x4 - core index']
  #allocation1 [shape = 'u32[144,128]{1,0:T(1,128)}', space=vmem, size = 0x12000, scoped, tag = 'internal scratch']
  %s0 = inlined_call_operand.vmem [shape: f32[16,32], index: 0, kind: input, shape index: {}]
  %s1 = inlined_call_operand.vmem [shape: bf16[32,64], index: 1, kind: input, shape index: {}]
  %s2 = inlined_call_operand.vmem [shape: f32[1,64], index: 2, kind: input, shape index: {}]
  %s3 = inlined_call_operand.vmem [shape: f32[1,64], index: 3, kind: input, shape index: {}]
  %s4 = inlined_call_operand.vmem [shape: f32[1,64], index: 4, kind: input, shape index: {}]
  %s5 = inlined_call_operand.vmem [shape: bf16[64,32], index: 5, kind: input, shape index: {}]
  %s6 = inlined_call_operand.vmem [shape: f32[1,32], index: 6, kind: input, shape index: {}]
  %s7 = inlined_call_operand.hbm [shape: f32[16,32], index: 7, kind: output, shape index: {}]
  %s8 = sld [smem:[#allocation0]]
  $region38: #{tpu_custom_call.1} parent=0
    _
  %s10 = ssub.s32 1, %s8
  %s11 = scalar_select 0, %s10, %s8
  $region1: #{tpu_custom_call.1} parent=0
    #allocation2 [shape = 'u8[8192]{0}', space=vmem, size = 0x2000, scoped, tag = 'output window, operand 0, single buffered']
    #allocation3 [shape = 's32[1]{0}', space=sflag, size = 0x4, scoped, tag = 'scoped memory for tpu_custom_call.1']
    %12 = vsyncpa [#allocation3], 0
    // Predicated region
    $region2: #{tpu_custom_call.1} parent=1 // pred_check
      _
    $region3: #{tpu_custom_call.1} parent=1 // pred_check_branch
      %14 = sbr.rel (0) target = $region5
    $region4: #{tpu_custom_call.1} parent=1 // pred_region
      _
    $region5: #{tpu_custom_call.1} parent=1 // pred_fallthru
      _
    // Predicated region
    $region6: #{tpu_custom_call.1} parent=1 // pred_check
      _
    $region7: #{tpu_custom_call.1} parent=1 // pred_check_branch
      %16 = sbr.rel (0) target = $region9
    $region8: #{tpu_custom_call.1} parent=1 // pred_region
      _
    $region9: #{tpu_custom_call.1} parent=1 // pred_fallthru
      _
    // Predicated region
    $region10: #{tpu_custom_call.1} parent=1 // pred_check
      _
    $region11: #{tpu_custom_call.1} parent=1 // pred_check_branch
      %18 = sbr.rel (0) target = $region13
    $region12: #{tpu_custom_call.1} parent=1 // pred_region
      _
    $region13: #{tpu_custom_call.1} parent=1 // pred_fallthru
      _
    // Predicated region
    $region14: #{tpu_custom_call.1} parent=1 // pred_check
      _
    $region15: #{tpu_custom_call.1} parent=1 // pred_check_branch
      %20 = sbr.rel (0) target = $region17
    $region16: #{tpu_custom_call.1} parent=1 // pred_region
      _
    $region17: #{tpu_custom_call.1} parent=1 // pred_fallthru
      _
    // Predicated region
    $region18: #{tpu_custom_call.1} parent=1 // pred_check
      _
    $region19: #{tpu_custom_call.1} parent=1 // pred_check_branch
      %22 = sbr.rel (0) target = $region21
    $region20: #{tpu_custom_call.1} parent=1 // pred_region
      _
    $region21: #{tpu_custom_call.1} parent=1 // pred_fallthru
      _
    // Predicated region
    $region22: #{tpu_custom_call.1} parent=1 // pred_check
      _
    $region23: #{tpu_custom_call.1} parent=1 // pred_check_branch
      %24 = sbr.rel (0) target = $region25
    $region24: #{tpu_custom_call.1} parent=1 // pred_region
      _
    $region25: #{tpu_custom_call.1} parent=1 // pred_fallthru
      _
    // Predicated region
    $region26: #{tpu_custom_call.1} parent=1 // pred_check
      _
    $region27: #{tpu_custom_call.1} parent=1 // pred_check_branch
      %26 = sbr.rel (0) target = $region29
    $region28: #{tpu_custom_call.1} parent=1 // pred_region
      _
    $region29: #{tpu_custom_call.1} parent=1 // pred_fallthru
      _
    %v28 = vld [vmem:[%s0] sm:$0xff]
    %v29 = vld [vmem:[%s0 + $0x8] sm:$0xff]
    %v30 = vpack.c.bf16 %v29, %v28
    %v31 = vld [vmem:[%s1] sm:$0xf]
    %v32 = vld [vmem:[%s1 + $0x4] sm:$0xf]
    %v33 = vld [vmem:[%s1 + $0x8] sm:$0xf]
    %v34 = vld [vmem:[%s1 + $0xc] sm:$0xf]
    %v35 = vld [vmem:[%s2] sm:$0x1]
    %v37 = vlaneseq
    %v38 = vshrl.u32 %v37, 7
    %v39 = vsub.s32 0, %v38
    %v40 = vrot.slane %v35, %v39
    %v46 = vunpack.c.l.b16 %v31
    %v47 = vunpack.c.l.b16 %v32
    %v48 = vunpack.c.l.b16 %v33
    %v49 = vunpack.c.l.b16 %v34
    %v50 = vpack.c.b16 %v47, %v46
    %v51 = vpack.c.b16 %v49, %v48
    %vm54 = vcmask 261120
    %v56 = vsel %vm54, %v30, 0
    %58 = vmatprep.subr.bf16.mxu0 0
    %59 = vmatpush1.bf16.msra.mxu0 %v50
    %60 = vmatprep.subr.bf16.mxu0 0
    %61 = vmatpush1.bf16.msra.mxu0 %v51
    %62 = vmatprep.subr.bf16.mxu0 0
    %63 = vmatpush1.bf16.msra.mxu0 0
    %64 = vmatprep.subr.bf16.mxu0 0
    %65 = vmatpush1.bf16.msra.mxu0 0
    %66 = vmatprep.subr.bf16.mxu0 0
    %67 = vmatpush1.bf16.msra.mxu0 0
    %68 = vmatprep.subr.bf16.mxu0 0
    %69 = vmatpush1.bf16.msra.mxu0 0
    %70 = vmatprep.subr.bf16.mxu0 0
    %71 = vmatpush1.bf16.msra.mxu0 0
    %72 = vmatprep.subr.bf16.mxu0 0
    %73 = vmatpush1.bf16.msra.mxu0 0
    %74 = vmatprep.subr.bf16.mxu0 0
    %75 = vmatpush1.bf16.msra.mxu0 0
    %76 = vmatprep.subr.bf16.mxu0 0
    %77 = vmatpush1.bf16.msra.mxu0 0
    %78 = vmatprep.subr.bf16.mxu0 0
    %79 = vmatpush1.bf16.msra.mxu0 0
    %80 = vmatprep.subr.bf16.mxu0 0
    %81 = vmatpush1.bf16.msra.mxu0 0
    %82 = vmatprep.subr.bf16.mxu0 0
    %83 = vmatpush1.bf16.msra.mxu0 0
    %84 = vmatprep.subr.bf16.mxu0 0
    %85 = vmatpush1.bf16.msra.mxu0 0
    %86 = vmatprep.subr.bf16.mxu0 0
    %87 = vmatpush1.bf16.msra.mxu0 0
    %88 = vmatprep.subr.bf16.mxu0 0
    %89 = vmatpush1.bf16.msra.mxu0 0
    %90 = vmatprep.mubr.bf16.mxu0 0
    %91 = vmatmul.mubr.bf16.gmra.mrb[0].mxu0 %v56
    %v92 = vpop.f32.mrb[0].mxu0
    %v93 = vadd.f32 %v40, %v92
    %v94 = vpop.f32.mrb[0].mxu0
    %v95 = vpop.f32.mrb[0].mxu0
    %v96 = vadd.f32 %v40, %v95
    %v97 = vpop.f32.mrb[0].mxu0
    %98 = vdwg.mxu0
    %vm99 = vcmask 523264
    %v100 = vsel %vm99, %v93, 0.0
    %101 = vadd.xlane.f32.xlu0 %v100
    %v102 = vpop.xlane.xlu0 %101
    %v103 = vsel %vm99, %v96, 0.0
    %104 = vadd.xlane.f32.xlu0 %v103
    %v105 = vpop.xlane.xlu0 %104
    %v106 = vrcp.pop 64.0
    %v107 = vmul.f32 %v102, %v106
    %v108 = vmul.f32 %v105, %v106
    %v109 = vsub.f32 %v93, %v107
    %v110 = vsub.f32 %v96, %v108
    %v111 = vmul.f32 %v109, %v109
    %v112 = vmul.f32 %v110, %v110
    %v113 = vsel %vm99, %v111, 0.0
    %114 = vadd.xlane.f32.xlu0 %v113
    %v115 = vpop.xlane.xlu0 %114
    %v116 = vsel %vm99, %v112, 0.0
    %117 = vadd.xlane.f32.xlu0 %v116
    %v118 = vpop.xlane.xlu0 %117
    %v119 = vmul.f32 %v115, %v106
    %v120 = vmul.f32 %v118, %v106
    %v121 = vadd.f32 %v119, 1e-05
    %v122 = vadd.f32 %v120, 1e-05
    %v123 = vrsqrt.pop %v121
    %v124 = vrsqrt.pop %v122
    %v125 = vmul.f32 %v109, %v123
    %v126 = vmul.f32 %v110, %v124
    %v127 = vld [vmem:[%s3] sm:$0x1]
    %v129 = vlaneseq
    %v130 = vshrl.u32 %v129, 7
    %v131 = vsub.s32 0, %v130
    %v132 = vrot.slane %v127, %v131
    %v134 = vmul.f32 %v125, %v132
    %v135 = vmul.f32 %v126, %v132
    %v136 = vld [vmem:[%s4] sm:$0x1]
    %v138 = vlaneseq
    %v139 = vshrl.u32 %v138, 7
    %v140 = vsub.s32 0, %v139
    %v141 = vrot.slane %v136, %v140
    %v143 = vadd.f32 %v134, %v141
    %v144 = vadd.f32 %v135, %v141
    %v145 = vmul.f32 %v143, 0.5
    %v146 = vmul.f32 %v144, 0.5
    %v147 = vmul.f32 %v143, 0.70710677
    %v148 = vmul.f32 %v144, 0.70710677
    %v149 = verf.f32.pop %v147
    %v150 = verf.f32.pop %v148
    %v151 = vadd.f32 %v149, 1.0
    %v152 = vadd.f32 %v150, 1.0
    %v153 = vmul.f32 %v145, %v151
    %v154 = vmul.f32 %v146, %v152
    %v155 = vpack.c.bf16 %v154, %v153
    %v156 = vld [vmem:[%s5] sm:$0xf]
    %v157 = vld [vmem:[%s5 + $0x4] sm:$0xf]
    %v158 = vld [vmem:[%s5 + $0x8] sm:$0xf]
    %v159 = vld [vmem:[%s5 + $0xc] sm:$0xf]
    %v160 = vld [vmem:[%s5 + $0x10] sm:$0xf]
    %v161 = vld [vmem:[%s5 + $0x14] sm:$0xf]
    %v162 = vld [vmem:[%s5 + $0x18] sm:$0xf]
    %v163 = vld [vmem:[%s5 + $0x1c] sm:$0xf]
    %v164 = vld [vmem:[%s6] sm:$0x1]
    %v166 = vlaneseq
    %v167 = vshrl.u32 %v166, 7
    %v168 = vsub.s32 0, %v167
    %v169 = vrot.slane %v164, %v168
    %v179 = vunpack.c.l.b16 %v156
    %v180 = vunpack.c.l.b16 %v157
    %v181 = vunpack.c.l.b16 %v158
    %v182 = vunpack.c.l.b16 %v159
    %v183 = vunpack.c.l.b16 %v160
    %v184 = vunpack.c.l.b16 %v161
    %v185 = vunpack.c.l.b16 %v162
    %v186 = vunpack.c.l.b16 %v163
    %v187 = vpack.c.b16 %v180, %v179
    %v188 = vpack.c.b16 %v182, %v181
    %v189 = vpack.c.b16 %v184, %v183
    %v190 = vpack.c.b16 %v186, %v185
    %v196 = vsel %vm99, %v155, 0
    %198 = vmatprep.subr.bf16.mxu0 0
    %199 = vmatpush1.bf16.msra.mxu0 %v187
    %200 = vmatprep.subr.bf16.mxu0 0
    %201 = vmatpush1.bf16.msra.mxu0 %v188
    %202 = vmatprep.subr.bf16.mxu0 0
    %203 = vmatpush1.bf16.msra.mxu0 %v189
    %204 = vmatprep.subr.bf16.mxu0 0
    %205 = vmatpush1.bf16.msra.mxu0 %v190
    %206 = vmatprep.subr.bf16.mxu0 0
    %207 = vmatpush1.bf16.msra.mxu0 0
    %208 = vmatprep.subr.bf16.mxu0 0
    %209 = vmatpush1.bf16.msra.mxu0 0
    %210 = vmatprep.subr.bf16.mxu0 0
    %211 = vmatpush1.bf16.msra.mxu0 0
    %212 = vmatprep.subr.bf16.mxu0 0
    %213 = vmatpush1.bf16.msra.mxu0 0
    %214 = vmatprep.subr.bf16.mxu0 0
    %215 = vmatpush1.bf16.msra.mxu0 0
    %216 = vmatprep.subr.bf16.mxu0 0
    %217 = vmatpush1.bf16.msra.mxu0 0
    %218 = vmatprep.subr.bf16.mxu0 0
    %219 = vmatpush1.bf16.msra.mxu0 0
    %220 = vmatprep.subr.bf16.mxu0 0
    %221 = vmatpush1.bf16.msra.mxu0 0
    %222 = vmatprep.subr.bf16.mxu0 0
    %223 = vmatpush1.bf16.msra.mxu0 0
    %224 = vmatprep.subr.bf16.mxu0 0
    %225 = vmatpush1.bf16.msra.mxu0 0
    %226 = vmatprep.subr.bf16.mxu0 0
    %227 = vmatpush1.bf16.msra.mxu0 0
    %228 = vmatprep.subr.bf16.mxu0 0
    %229 = vmatpush1.bf16.msra.mxu0 0
    %230 = vmatprep.mubr.bf16.mxu0 0
    %231 = vmatmul.mubr.bf16.gmra.mrb[0].mxu0 %v196
    %v232 = vpop.f32.mrb[0].mxu0
    %v233 = vadd.f32 %v169, %v232
    %v234 = vpop.f32.mrb[0].mxu0
    %v235 = vpop.f32.mrb[0].mxu0
    %v236 = vadd.f32 %v169, %v235
    %v237 = vpop.f32.mrb[0].mxu0
    %238 = vdwg.mxu0
    %239 = vst.msk [vmem:[#allocation2] sm:$0xff] %vm54, %v233
    %240 = vst.msk [vmem:[#allocation2 + $0x8] sm:$0xff] %vm54, %v236
    // Predicated region
    $region30: #{tpu_custom_call.1} parent=1 // pred_check
      _
    $region31: #{tpu_custom_call.1} parent=1 // pred_check_branch
      %242 = sbr.rel (0) target = $region33
    $region32: #{tpu_custom_call.1} parent=1 // pred_region
      %s244 = ssub.s32 256, 256
      %245 = vsyncadd [#allocation3], %s244
      %s246 = sshll.u32 [#allocation2], 4
      %s247 = int_to_ptr.vmem [resolvable:$true] %s246
      %252 = dma.vmem_to_hbm [thread:$0]  %s247, 256, %s7, [#allocation3], 128, 128, 8
    $region33: #{tpu_custom_call.1} parent=1 // pred_fallthru
      _
    // Predicated region
    $region34: #{tpu_custom_call.1} parent=1 // pred_check
      _
    $region35: #{tpu_custom_call.1} parent=1 // pred_check_branch
      %254 = sbr.rel (0) target = $region37
    $region36: #{tpu_custom_call.1} parent=1 // pred_region
      %255 = dma.done [#allocation3], 256
    $region37: #{tpu_custom_call.1} parent=1 // pred_fallthru
      _
    %256 = vsyncpa [#allocation3], 1

</llo_original>
